<compile_context>
chip_gen: v5e
topology: v5e:2x2
jax: 0.10.0
libtpu: 0.0.40
codegen_flags: <defaults>
</compile_context>

<pallas_src>
import jax
import jax.numpy as jnp
from jax.experimental import pallas as pl
from jax.experimental.pallas import tpu as pltpu

HID1, HID2 = 400, 300          # logical (PyTorch) hidden sizes
HID1_PAD, HID2_PAD = 512, 384  # lane-aligned padded sizes


def _round_up(n, m):
    return ((n + m - 1) // m) * m


def _cdiv(a, b):
    return (a + b - 1) // b


def _squeeze_keep_batch(a):
    # Mirror torch's .squeeze() but never drop the batch axis (the PyTorch
    # module silently breaks for B == 1; keep (B, feature) semantics instead).
    axes = tuple(i for i in range(1, a.ndim) if a.shape[i] == 1)
    if axes:
        a = jnp.squeeze(a, axis=axes)
    if a.ndim == 1:
        a = a[:, None]
    return a


# ---------------------------------------------------------------------------
# Kernel
# ---------------------------------------------------------------------------
def critic_kernel(x_ref, u_ref, w1_ref, b1_ref, w2_ref, b2_ref, w3_ref, b3_ref,
                  o_ref, xu_ref):
    bf16 = jnp.bfloat16
    sdim = x_ref.shape[1]

    # Assemble cat([x, u], dim=1) in VMEM (two masked lane-slice stores) so the
    # concatenation never touches HBM and layer 1 is a single MXU pass.
    xu_ref[:, :sdim] = x_ref[...]
    xu_ref[:, sdim:] = u_ref[...]

    # Layer 1: one fused matmul, bf16 on the MXU, f32 accumulation.
    h1 = jnp.dot(xu_ref[...].astype(bf16), w1_ref[...],
                 preferred_element_type=jnp.float32) + b1_ref[...]
    h1 = jnp.maximum(h1, 0.0)

    # Layer 2 (the big matmul): bf16 inputs on the MXU, f32 accumulation.
    h2 = jnp.dot(h1.astype(bf16), w2_ref[...],
                 preferred_element_type=jnp.float32) + b2_ref[...]
    h2 = jnp.maximum(h2, 0.0)

    # Layer 3 (N=1): VPU multiply + cross-lane reduction instead of a 1-column
    # MXU pass; b3 read from SMEM.  Emit lane-dense (1, TB) so the store path
    # is unmasked vst and the HBM output isn't lane-padded 128x.
    q = jnp.sum(h2 * w3_ref[...], axis=-1) + b3_ref[0]        # (TB,)
    o_ref[...] = q[None, :].astype(o_ref.dtype)


# ---------------------------------------------------------------------------
# Parameters
# ---------------------------------------------------------------------------
def make_raw_params(state_dim, action_dim, key):
    """f32 parameters with PyTorch nn.Linear-style uniform init."""
    d_in = state_dim + action_dim
    keys = jax.random.split(key, 6)

    def linear(kw, kb, fan_in, fan_out):
        bound = 1.0 / jnp.sqrt(jnp.float32(fan_in))
        w = jax.random.uniform(kw, (fan_in, fan_out), jnp.float32, -bound, bound)
        b = jax.random.uniform(kb, (1, fan_out), jnp.float32, -bound, bound)
        return w, b

    w1, b1 = linear(keys[0], keys[1], d_in, HID1)
    w2, b2 = linear(keys[2], keys[3], HID1, HID2)
    w3, b3 = linear(keys[4], keys[5], HID2, 1)
    return (w1, b1, w2, b2, w3, b3)


def pack_params(raw):
    """Zero-pad / cast raw params into the layout the kernel expects."""
    w1, b1, w2, b2, w3, b3 = raw
    p1 = HID1_PAD - HID1
    p2 = HID2_PAD - HID2
    w1p = jnp.pad(w1, ((0, 0), (0, p1))).astype(jnp.bfloat16)    # (d_in, HID1_PAD)
    b1p = jnp.pad(b1, ((0, 0), (0, p1)))                         # (1, HID1_PAD) f32
    w2p = jnp.pad(w2, ((0, p1), (0, p2))).astype(jnp.bfloat16)   # (HID1_PAD, HID2_PAD)
    b2p = jnp.pad(b2, ((0, 0), (0, p2)))                         # (1, HID2_PAD) f32
    w3r = jnp.pad(w3.T, ((0, 0), (0, p2)))                       # (1, HID2_PAD) f32 row
    b3p = b3.reshape(1)                                          # (1,) f32 -> SMEM
    return (w1p, b1p, w2p, b2p, w3r, b3p)


# ---------------------------------------------------------------------------
# Forward wrapper
# ---------------------------------------------------------------------------
def _choose_batch_tile(B, tb):
    tb = max(128, (tb // 128) * 128)
    if B <= 128:
        # Single small block; pad the batch up to it (at most 7 extra rows).
        return _round_up(max(B, 8), 8)
    # Lane-aligned tile; cap so large batches always yield >= 2 grid steps
    # (keeps both v7x TensorCores busy via the "parallel" batch axis).
    return max(128, min(tb, _round_up(_cdiv(B, 2), 128)))


def critic_forward(x, u, packed, *, tb=1024):
    x = _squeeze_keep_batch(x).astype(jnp.float32)
    u = _squeeze_keep_batch(u).astype(jnp.float32)
    B, sdim = x.shape
    adim = u.shape[1]
    d_in = sdim + adim

    w1, b1, w2, b2, w3, b3 = packed

    TB = _choose_batch_tile(B, tb)
    if B < TB:  # small-batch single-block path only; large B is never padded
        x = jnp.pad(x, ((0, TB - B), (0, 0)))
        u = jnp.pad(u, ((0, TB - B), (0, 0)))
    nblk = _cdiv(B, TB)  # large B: last block may over-read; rows are
                         # independent and junk rows are sliced off below.

    batch_map = lambda i: (i, 0)
    const_map = lambda i: (0, 0)

    grid_spec = pltpu.PrefetchScalarGridSpec(
        num_scalar_prefetch=0,
        grid=(nblk,),
        in_specs=[
            pl.BlockSpec((TB, sdim), batch_map),
            pl.BlockSpec((TB, adim), batch_map),
            pl.BlockSpec(w1.shape, const_map),   # weights: VMEM-resident,
            pl.BlockSpec(b1.shape, const_map),   # DMA'd once (constant block)
            pl.BlockSpec(w2.shape, const_map),
            pl.BlockSpec(b2.shape, const_map),
            pl.BlockSpec(w3.shape, const_map),
            pl.BlockSpec(memory_space=pltpu.MemorySpace.SMEM),   # b3 scalar
        ],
        out_specs=pl.BlockSpec((1, TB), lambda i: (0, i)),        # lane-dense q
        scratch_shapes=[pltpu.VMEM((TB, d_in), jnp.float32)],     # cat([x,u])
    )

    q_rows = pl.pallas_call(
        critic_kernel,
        out_shape=jax.ShapeDtypeStruct((1, nblk * TB), jnp.float32),
        grid_spec=grid_spec,
        compiler_params=pltpu.CompilerParams(
            dimension_semantics=("parallel",),
        ),
    )(x, u, w1, b1, w2, b2, w3, b3)

    return q_rows.reshape(-1)[:B][:, None]


if __name__ == "__main__":
    # Small, self-consistent shapes: batch=2, state_dim=16, action_dim=4.
    B, STATE_DIM, ACTION_DIM = 2, 16, 4

    key = jax.random.PRNGKey(0)
    k_x, k_u, k_p = jax.random.split(key, 3)

    x = jax.random.normal(k_x, (B, STATE_DIM), jnp.float32)
    u = jax.random.normal(k_u, (B, ACTION_DIM), jnp.float32)

    raw = make_raw_params(STATE_DIM, ACTION_DIM, k_p)
    packed = pack_params(raw)

    q = critic_forward(x, u, packed)
    q = jax.block_until_ready(q)
    assert q.shape == (B, 1)

    # Pure-JAX reference performing the same bf16-weight math as the kernel.
    w1, b1, w2, b2, w3, b3 = raw
    bf = jnp.bfloat16
    xu = jnp.concatenate([x, u], axis=1)
    h1 = jnp.maximum(
        jnp.dot(xu.astype(bf), w1.astype(bf),
                preferred_element_type=jnp.float32) + b1, 0.0)
    h2 = jnp.maximum(
        jnp.dot(h1.astype(bf), w2.astype(bf),
                preferred_element_type=jnp.float32) + b2, 0.0)
    q_bf16_ref = h2 @ w3 + b3
    assert jnp.allclose(q, q_bf16_ref, atol=1e-2, rtol=1e-2)

    # Sanity check against full-f32 math (looser tolerance: bf16 weights).
    h1f = jnp.maximum(xu @ w1 + b1, 0.0)
    h2f = jnp.maximum(h1f @ w2 + b2, 0.0)
    q_f32_ref = h2f @ w3 + b3
    assert jnp.allclose(q, q_f32_ref, atol=5e-2, rtol=5e-2)

    print("KERNEL_OK")
</pallas_src>

<mosaic_0001>
module attributes {stable_mosaic.version = 11 : i64} {
  func.func @critic_kernel(%arg0: i32, %arg1: memref<8x16xf32, #tpu.memory_space<vmem>>, %arg2: memref<8x4xf32, #tpu.memory_space<vmem>>, %arg3: memref<20x512xbf16, #tpu.memory_space<vmem>>, %arg4: memref<1x512xf32, #tpu.memory_space<vmem>>, %arg5: memref<512x384xbf16, #tpu.memory_space<vmem>>, %arg6: memref<1x384xf32, #tpu.memory_space<vmem>>, %arg7: memref<1x384xf32, #tpu.memory_space<vmem>>, %arg8: memref<1xf32, #tpu.memory_space<smem>>, %arg9: memref<1x8xf32, #tpu.memory_space<vmem>>, %arg10: memref<8x20xf32, #tpu.memory_space<vmem>>) attributes {dimension_semantics = [#tpu.dimension_semantics<parallel>], iteration_bounds = array<i64: 1>, scalar_prefetch = 0 : i64, scratch_operands = 1 : i64, tpu.core_type = #tpu.core_type<tc>, window_params = [{transform_indices = @transform_0, window_bounds = array<i64: 8, 16>}, {transform_indices = @transform_1, window_bounds = array<i64: 8, 4>}, {pipeline_mode = #tpu.pipeline_mode<synchronous>, transform_indices = @transform_2, window_bounds = array<i64: 20, 512>}, {pipeline_mode = #tpu.pipeline_mode<synchronous>, transform_indices = @transform_3, window_bounds = array<i64: 1, 512>}, {pipeline_mode = #tpu.pipeline_mode<synchronous>, transform_indices = @transform_4, window_bounds = array<i64: 512, 384>}, {pipeline_mode = #tpu.pipeline_mode<synchronous>, transform_indices = @transform_5, window_bounds = array<i64: 1, 384>}, {pipeline_mode = #tpu.pipeline_mode<synchronous>, transform_indices = @transform_6, window_bounds = array<i64: 1, 384>}, {transform_indices = @transform_7, window_bounds = array<i64: 1>}, {transform_indices = @transform_8, window_bounds = array<i64: 1, 8>}]} {
    %c0 = arith.constant 0 : index
    %c0_0 = arith.constant 0 : index
    %0 = vector.load %arg1[%c0, %c0_0] : memref<8x16xf32, #tpu.memory_space<vmem>>, vector<8x16xf32>
    %c0_1 = arith.constant 0 : index
    %c0_2 = arith.constant 0 : index
    %1 = vector.load %arg10[%c0_1, %c0_2] : memref<8x20xf32, #tpu.memory_space<vmem>>, vector<8x16xf32>
    tpu.vector_store %arg10[%c0_1, %c0_2], %0 {strides = array<i32>} : memref<8x20xf32, #tpu.memory_space<vmem>>, vector<8x16xf32>,
    %c0_3 = arith.constant 0 : index
    %c0_4 = arith.constant 0 : index
    %2 = vector.load %arg2[%c0_3, %c0_4] : memref<8x4xf32, #tpu.memory_space<vmem>>, vector<8x4xf32>
    %c0_5 = arith.constant 0 : index
    %c16 = arith.constant 16 : index
    %3 = vector.load %arg10[%c0_5, %c16] : memref<8x20xf32, #tpu.memory_space<vmem>>, vector<8x4xf32>
    tpu.vector_store %arg10[%c0_5, %c16], %2 {strides = array<i32>} : memref<8x20xf32, #tpu.memory_space<vmem>>, vector<8x4xf32>,
    %c0_6 = arith.constant 0 : index
    %c0_7 = arith.constant 0 : index
    %4 = vector.load %arg10[%c0_6, %c0_7] : memref<8x20xf32, #tpu.memory_space<vmem>>, vector<8x20xf32>
    %5 = arith.truncf %4 : vector<8x20xf32> to vector<8x20xbf16>
    %c0_8 = arith.constant 0 : index
    %c0_9 = arith.constant 0 : index
    %6 = vector.load %arg3[%c0_8, %c0_9] : memref<20x512xbf16, #tpu.memory_space<vmem>>, vector<20x512xbf16>
    %cst = arith.constant dense<0.000000e+00> : vector<8x512xf32>
    %7 = tpu.matmul %5, %6, %cst {dimension_numbers = #tpu.dot_dimension_numbers<[1], [0], [0], [1], [0, 0, 1, 1], [], []>} : vector<8x20xbf16>, vector<20x512xbf16>, vector<8x512xf32> -> vector<8x512xf32>
    %c0_10 = arith.constant 0 : index
    %c0_11 = arith.constant 0 : index
    %8 = vector.load %arg4[%c0_10, %c0_11] : memref<1x512xf32, #tpu.memory_space<vmem>>, vector<1x512xf32>
    %9 = vector.broadcast %8 : vector<1x512xf32> to vector<8x512xf32>
    %10 = arith.addf %7, %9 : vector<8x512xf32>
    %cst_12 = arith.constant 0.000000e+00 : f32
    %11 = vector.broadcast %cst_12 : f32 to vector<8x512xf32>
    %12 = arith.maximumf %10, %11 : vector<8x512xf32>
    %13 = arith.truncf %12 : vector<8x512xf32> to vector<8x512xbf16>
    %c0_13 = arith.constant 0 : index
    %c0_14 = arith.constant 0 : index
    %14 = vector.load %arg5[%c0_13, %c0_14] : memref<512x384xbf16, #tpu.memory_space<vmem>>, vector<512x384xbf16>
    %cst_15 = arith.constant dense<0.000000e+00> : vector<8x384xf32>
    %15 = tpu.matmul %13, %14, %cst_15 {dimension_numbers = #tpu.dot_dimension_numbers<[1], [0], [0], [1], [0, 0, 1, 1], [], []>} : vector<8x512xbf16>, vector<512x384xbf16>, vector<8x384xf32> -> vector<8x384xf32>
    %c0_16 = arith.constant 0 : index
    %c0_17 = arith.constant 0 : index
    %16 = vector.load %arg6[%c0_16, %c0_17] : memref<1x384xf32, #tpu.memory_space<vmem>>, vector<1x384xf32>
    %17 = vector.broadcast %16 : vector<1x384xf32> to vector<8x384xf32>
    %18 = arith.addf %15, %17 : vector<8x384xf32>
    %cst_18 = arith.constant 0.000000e+00 : f32
    %19 = vector.broadcast %cst_18 : f32 to vector<8x384xf32>
    %20 = arith.maximumf %18, %19 : vector<8x384xf32>
    %c0_19 = arith.constant 0 : index
    %c0_20 = arith.constant 0 : index
    %21 = vector.load %arg7[%c0_19, %c0_20] : memref<1x384xf32, #tpu.memory_space<vmem>>, vector<1x384xf32>
    %22 = vector.broadcast %21 : vector<1x384xf32> to vector<8x384xf32>
    %23 = arith.mulf %20, %22 : vector<8x384xf32>
    %cst_21 = arith.constant dense<0.000000e+00> : vector<8xf32>
    %24 = vector.multi_reduction <add>, %23, %cst_21 [1] : vector<8x384xf32> to vector<8xf32>
    %c0_22 = arith.constant 0 : index
    %25 = memref.load %arg8[%c0_22] : memref<1xf32, #tpu.memory_space<smem>>
    %26 = vector.broadcast %25 : f32 to vector<8xf32>
    %27 = arith.addf %24, %26 : vector<8xf32>
    %28 = vector.shape_cast %27 : vector<8xf32> to vector<1x8xf32>
    %c0_23 = arith.constant 0 : index
    %c0_24 = arith.constant 0 : index
    %29 = vector.load %arg9[%c0_23, %c0_24] : memref<1x8xf32, #tpu.memory_space<vmem>>, vector<1x8xf32>
    tpu.vector_store %arg9[%c0_23, %c0_24], %28 {strides = array<i32>} : memref<1x8xf32, #tpu.memory_space<vmem>>, vector<1x8xf32>,
    return
  }
  func.func @transform_0(%arg0: i32) -> (i32, i32) {
    %c0_i32 = arith.constant 0 : i32
    %c0_i32_0 = arith.constant 0 : i32
    return %arg0, %c0_i32 : i32, i32
  }
  func.func @transform_1(%arg0: i32) -> (i32, i32) {
    %c0_i32 = arith.constant 0 : i32
    %c0_i32_0 = arith.constant 0 : i32
    return %arg0, %c0_i32 : i32, i32
  }
  func.func @transform_2(%arg0: i32) -> (i32, i32) {
    %c0_i32 = arith.constant 0 : i32
    %c0_i32_0 = arith.constant 0 : i32
    %c0_i32_1 = arith.constant 0 : i32
    return %c0_i32, %c0_i32_0 : i32, i32
  }
  func.func @transform_3(%arg0: i32) -> (i32, i32) {
    %c0_i32 = arith.constant 0 : i32
    %c0_i32_0 = arith.constant 0 : i32
    %c0_i32_1 = arith.constant 0 : i32
    return %c0_i32, %c0_i32_0 : i32, i32
  }
  func.func @transform_4(%arg0: i32) -> (i32, i32) {
    %c0_i32 = arith.constant 0 : i32
    %c0_i32_0 = arith.constant 0 : i32
    %c0_i32_1 = arith.constant 0 : i32
    return %c0_i32, %c0_i32_0 : i32, i32
  }
  func.func @transform_5(%arg0: i32) -> (i32, i32) {
    %c0_i32 = arith.constant 0 : i32
    %c0_i32_0 = arith.constant 0 : i32
    %c0_i32_1 = arith.constant 0 : i32
    return %c0_i32, %c0_i32_0 : i32, i32
  }
  func.func @transform_6(%arg0: i32) -> (i32, i32) {
    %c0_i32 = arith.constant 0 : i32
    %c0_i32_0 = arith.constant 0 : i32
    %c0_i32_1 = arith.constant 0 : i32
    return %c0_i32, %c0_i32_0 : i32, i32
  }
  func.func @transform_7(%arg0: i32) -> i32 {
    %c0_i32 = arith.constant 0 : i32
    %c0_i32_0 = arith.constant 0 : i32
    return %c0_i32 : i32
  }
  func.func @transform_8(%arg0: i32) -> (i32, i32) {
    %c0_i32 = arith.constant 0 : i32
    %c0_i32_0 = arith.constant 0 : i32
    return %c0_i32, %arg0 : i32, i32
  }
}

</mosaic_0001>

<llo_original>
// kernel: tpu_custom_call.1
$region0: #{tpu_custom_call.1}
  #allocation0 [shape = 'u32[]', space=smem, size = 0x4, offset = 0x4, fixed_abs, tag = 'smem constant byte address 0x4 - core index']
  #allocation1 [shape = 'u32[72,128]{1,0:T(1,128)}', space=vmem, size = 0x9000, scoped, tag = 'internal scratch']
  #allocation2 [shape = 'f32[8,20]{1,0:T(8,128)}', space=vmem, size = 0x1000, scoped, tag = 'scratch operand']
  #allocation3 [shape = 'f32[1]{0:T(128)S(6)}', space=smem, size = 0x200, scoped, tag = 'scoped memory for tpu_custom_call.1']
  %s0 = inlined_call_operand.vmem [shape: f32[8,16], index: 0, kind: input, shape index: {}]
  %s1 = inlined_call_operand.vmem [shape: f32[8,4], index: 1, kind: input, shape index: {}]
  %s2 = inlined_call_operand.hbm [shape: bf16[20,512], index: 2, kind: input, shape index: {}]
  %s3 = inlined_call_operand.vmem [shape: f32[1,512], index: 3, kind: input, shape index: {}]
  %s4 = inlined_call_operand.hbm [shape: bf16[512,384], index: 4, kind: input, shape index: {}]
  %s5 = inlined_call_operand.vmem [shape: f32[1,384], index: 5, kind: input, shape index: {}]
  %s6 = inlined_call_operand.vmem [shape: f32[1,384], index: 6, kind: input, shape index: {}]
  %s7 = inlined_call_operand.<no memory space> [shape: f32[1], index: 7, kind: input, shape index: {}]
  %s8 = inlined_call_operand.hbm [shape: f32[1,8], index: 8, kind: output, shape index: {}]
  %s9 = sld [smem:[#allocation0]]
  $region50: #{tpu_custom_call.1} parent=0
    _
  %s11 = ssub.s32 1, %s9
  %s12 = scalar_select 0, %s11, %s9
  %13 = sst [smem:[#allocation3]] %s7
  $region1: #{tpu_custom_call.1} parent=0
    #allocation4 [shape = 'u8[24576]{0}', space=vmem, size = 0x6000, scoped, tag = 'input window, operand 2, single buffered']
    #allocation5 [shape = 's32[1]{0}', space=sflag, size = 0x4, scoped, tag = 'scoped memory for tpu_custom_call.1']
    #allocation6 [shape = 's32[1]{0}', space=sflag, size = 0x4, scoped, tag = 'scoped memory for tpu_custom_call.1']
    #allocation7 [shape = 'u8[393216]{0}', space=vmem, size = 0x60000, scoped, tag = 'input window, operand 4, single buffered']
    #allocation8 [shape = 's32[1]{0}', space=sflag, size = 0x4, scoped, tag = 'scoped memory for tpu_custom_call.1']
    #allocation9 [shape = 'u8[512]{0}', space=vmem, size = 0x400, scoped, tag = 'output window, operand 0, single buffered']
    %14 = vsyncpa [#allocation5], 0
    %15 = vsyncpa [#allocation8], 0
    %16 = vsyncpa [#allocation6], 0
    // Predicated region
    $region2: #{tpu_custom_call.1} parent=1 // pred_check
      _
    $region3: #{tpu_custom_call.1} parent=1 // pred_check_branch
      %18 = sbr.rel (0) target = $region5
    $region4: #{tpu_custom_call.1} parent=1 // pred_region
      _
    $region5: #{tpu_custom_call.1} parent=1 // pred_fallthru
      _
    // Predicated region
    $region6: #{tpu_custom_call.1} parent=1 // pred_check
      _
    $region7: #{tpu_custom_call.1} parent=1 // pred_check_branch
      %20 = sbr.rel (0) target = $region9
    $region8: #{tpu_custom_call.1} parent=1 // pred_region
      _
    $region9: #{tpu_custom_call.1} parent=1 // pred_fallthru
      _
    // Predicated region
    $region10: #{tpu_custom_call.1} parent=1 // pred_check
      _
    $region11: #{tpu_custom_call.1} parent=1 // pred_check_branch
      %22 = sbr.rel (0) target = $region13
    $region12: #{tpu_custom_call.1} parent=1 // pred_region
      %24 = vsyncadd [#allocation5], 0
      %s25 = sshll.u32 %s2, 4
      %s26 = int_to_ptr.hbm [resolvable:$true] %s25
      %s27 = sshll.u32 [#allocation4], 4
      %s28 = int_to_ptr.vmem [resolvable:$true] %s27
      %33 = dma.hbm_to_vmem [thread:$0]  %s26, 768, %s28, [#allocation5], 256, 256, 16
    $region13: #{tpu_custom_call.1} parent=1 // pred_fallthru
      _
    // Predicated region
    $region14: #{tpu_custom_call.1} parent=1 // pred_check
      _
    $region15: #{tpu_custom_call.1} parent=1 // pred_check_branch
      %35 = sbr.rel (0) target = $region17
    $region16: #{tpu_custom_call.1} parent=1 // pred_region
      _
    $region17: #{tpu_custom_call.1} parent=1 // pred_fallthru
      _
    // Predicated region
    $region18: #{tpu_custom_call.1} parent=1 // pred_check
      _
    $region19: #{tpu_custom_call.1} parent=1 // pred_check_branch
      %37 = sbr.rel (0) target = $region21
    $region20: #{tpu_custom_call.1} parent=1 // pred_region
      %39 = vsyncadd [#allocation8], 0
      %s40 = sshll.u32 %s4, 4
      %s41 = int_to_ptr.hbm [resolvable:$true] %s40
      %s42 = sshll.u32 [#allocation7], 4
      %s43 = int_to_ptr.vmem [resolvable:$true] %s42
      %48 = dma.hbm_to_vmem [thread:$0]  %s41, 12288, %s43, [#allocation8], 192, 192, 12
    $region21: #{tpu_custom_call.1} parent=1 // pred_fallthru
      _
    // Predicated region
    $region22: #{tpu_custom_call.1} parent=1 // pred_check
      _
    $region23: #{tpu_custom_call.1} parent=1 // pred_check_branch
      %50 = sbr.rel (0) target = $region25
    $region24: #{tpu_custom_call.1} parent=1 // pred_region
      _
    $region25: #{tpu_custom_call.1} parent=1 // pred_fallthru
      _
    // Predicated region
    $region26: #{tpu_custom_call.1} parent=1 // pred_check
      _
    $region27: #{tpu_custom_call.1} parent=1 // pred_check_branch
      %52 = sbr.rel (0) target = $region29
    $region28: #{tpu_custom_call.1} parent=1 // pred_region
      _
    $region29: #{tpu_custom_call.1} parent=1 // pred_fallthru
      _
    // Predicated region
    $region30: #{tpu_custom_call.1} parent=1 // pred_check
      _
    $region31: #{tpu_custom_call.1} parent=1 // pred_check_branch
      %54 = sbr.rel (0) target = $region33
    $region32: #{tpu_custom_call.1} parent=1 // pred_region
      _
    $region33: #{tpu_custom_call.1} parent=1 // pred_fallthru
      _
    // Predicated region
    $region34: #{tpu_custom_call.1} parent=1 // pred_check
      _
    $region35: #{tpu_custom_call.1} parent=1 // pred_check_branch
      %56 = sbr.rel (0) target = $region37
    $region36: #{tpu_custom_call.1} parent=1 // pred_region
      %58 = dma.done [#allocation5], 768
    $region37: #{tpu_custom_call.1} parent=1 // pred_fallthru
      _
    // Predicated region
    $region38: #{tpu_custom_call.1} parent=1 // pred_check
      _
    $region39: #{tpu_custom_call.1} parent=1 // pred_check_branch
      %60 = sbr.rel (0) target = $region41
    $region40: #{tpu_custom_call.1} parent=1 // pred_region
      %62 = dma.done [#allocation8], 12288
    $region41: #{tpu_custom_call.1} parent=1 // pred_fallthru
      _
    %v64 = vld [vmem:[%s0] sm:$0xff]
    %vm65 = vcmask 130048
    %66 = vst.msk [vmem:[#allocation2] sm:$0xff] %vm65, %v64
    %v67 = vld [vmem:[%s1] sm:$0xff]
    %69 = vrot.lane.b32.xlu0 %v67, 16
    %v70 = vpop.permute.xlu0 %69
    %vm72 = vcmask 162944
    %73 = vst.msk [vmem:[#allocation2] sm:$0xff] %vm72, %v70
    %v74 = vld [vmem:[#allocation2] sm:$0xff]
    %v75 = vpack.c.bf16 %v74, %v74
    %v76 = vld [vmem:[#allocation4] sm:$0xff]
    %v77 = vld [vmem:[#allocation4 + $0x8] sm:$0xff]
    %v78 = vld [vmem:[#allocation4 + $0x10] sm:$0xff]
    %v79 = vld [vmem:[#allocation4 + $0x18] sm:$0xff]
    %v80 = vld [vmem:[#allocation4 + $0x20] sm:$0x33]
    %v81 = vld [vmem:[#allocation4 + $0x28] sm:$0x33]
    %v82 = vld [vmem:[%s3] sm:$0xf]
    %v84 = vperm.slane %v82, 0
    %v85 = vperm.slane %v82, 1
    %v86 = vperm.slane %v82, 2
    %v87 = vperm.slane %v82, 3
    %v98 = vunpack.c.l.b16 %v76
    %v99 = vunpack.c.h.b16 %v76
    %v100 = vunpack.c.l.b16 %v77
    %v101 = vunpack.c.h.b16 %v77
    %v102 = vunpack.c.l.b16 %v78
    %v103 = vunpack.c.h.b16 %v78
    %v104 = vunpack.c.l.b16 %v79
    %v105 = vunpack.c.h.b16 %v79
    %v106 = vunpack.c.l.b16 %v80
    %v107 = vunpack.c.h.b16 %v80
    %v108 = vunpack.c.l.b16 %v81
    %v109 = vunpack.c.h.b16 %v81
    %v110 = vpack.c.b16 %v102, %v98
    %v111 = vpack.c.b16 %v103, %v99
    %v112 = vpack.c.b16 %v104, %v100
    %v113 = vpack.c.b16 %v105, %v101
    %v114 = vpack.c.b16 %v106, %v106
    %v115 = vpack.c.b16 %v107, %v107
    %v116 = vpack.c.b16 %v108, %v108
    %v117 = vpack.c.b16 %v109, %v109
    %vm122 = vcmask 162816
    %v124 = vsel %vm122, %v75, 0
    %vm126 = vcmask 1041408
    %v128 = vsel %vm126, %v114, 0
    %v131 = vsel %vm126, %v115, 0
    %v134 = vsel %vm126, %v116, 0
    %v137 = vsel %vm126, %v117, 0
    %139 = vmatpush.bf16.msra.mxu0 0
    %140 = vmatpush.bf16.msra.mxu0 0
    %141 = vmatpush.bf16.msra.mxu0 0
    %142 = vmatpush.bf16.msra.mxu0 0
    %143 = vmatpush.bf16.msra.mxu0 0
    %144 = vmatpush.bf16.msra.mxu0 0
    %145 = vmatpush.bf16.msra.mxu0 %v128
    %146 = vmatpush.bf16.msra.mxu0 %v110
    %147 = vmatmul.bf16.gmra.mxu0 %v124
    %v148 = vpop.f32.mrf.mxu0
    %v149 = vadd.f32 %v84, %v148
    %v150 = vpop.f32.mrf.mxu0
    %151 = vdwg.mxu0
    %152 = vmatpush.bf16.msra.mxu0 0
    %153 = vmatpush.bf16.msra.mxu0 0
    %154 = vmatpush.bf16.msra.mxu0 0
    %155 = vmatpush.bf16.msra.mxu0 0
    %156 = vmatpush.bf16.msra.mxu0 0
    %157 = vmatpush.bf16.msra.mxu0 0
    %158 = vmatpush.bf16.msra.mxu0 %v131
    %159 = vmatpush.bf16.msra.mxu0 %v111
    %160 = vmatmul.bf16.gmra.mxu0 %v124
    %v161 = vpop.f32.mrf.mxu0
    %v162 = vadd.f32 %v85, %v161
    %v163 = vpop.f32.mrf.mxu0
    %164 = vdwg.mxu0
    %165 = vmatpush.bf16.msra.mxu0 0
    %166 = vmatpush.bf16.msra.mxu0 0
    %167 = vmatpush.bf16.msra.mxu0 0
    %168 = vmatpush.bf16.msra.mxu0 0
    %169 = vmatpush.bf16.msra.mxu0 0
    %170 = vmatpush.bf16.msra.mxu0 0
    %171 = vmatpush.bf16.msra.mxu0 %v134
    %172 = vmatpush.bf16.msra.mxu0 %v112
    %173 = vmatmul.bf16.gmra.mxu0 %v124
    %v174 = vpop.f32.mrf.mxu0
    %v175 = vadd.f32 %v86, %v174
    %v176 = vpop.f32.mrf.mxu0
    %177 = vdwg.mxu0
    %178 = vmatpush.bf16.msra.mxu0 0
    %179 = vmatpush.bf16.msra.mxu0 0
    %180 = vmatpush.bf16.msra.mxu0 0
    %181 = vmatpush.bf16.msra.mxu0 0
    %182 = vmatpush.bf16.msra.mxu0 0
    %183 = vmatpush.bf16.msra.mxu0 0
    %184 = vmatpush.bf16.msra.mxu0 %v137
    %185 = vmatpush.bf16.msra.mxu0 %v113
    %186 = vmatmul.bf16.gmra.mxu0 %v124
    %v187 = vpop.f32.mrf.mxu0
    %v188 = vadd.f32 %v87, %v187
    %v189 = vpop.f32.mrf.mxu0
    %190 = vdwg.mxu0
    %v191 = vmax.f32 %v149, 0.0
    %v192 = vmax.f32 %v162, 0.0
    %v193 = vmax.f32 %v175, 0.0
    %v194 = vmax.f32 %v188, 0.0
    %v195 = vpack.c.bf16 %v191, %v191
    %v196 = vpack.c.bf16 %v192, %v192
    %v197 = vpack.c.bf16 %v193, %v193
    %v198 = vpack.c.bf16 %v194, %v194
    %v199 = vld [vmem:[#allocation7] sm:$0xff]
    %v200 = vld [vmem:[#allocation7 + $0x8] sm:$0xf]
    %v201 = vld [vmem:[#allocation7 + $0xc] sm:$0xff]
    %v202 = vld [vmem:[#allocation7 + $0x14] sm:$0xf]
    %v203 = vld [vmem:[#allocation7 + $0x18] sm:$0xff]
    %v204 = vld [vmem:[#allocation7 + $0x20] sm:$0xf]
    %v205 = vld [vmem:[#allocation7 + $0x24] sm:$0xff]
    %v206 = vld [vmem:[#allocation7 + $0x2c] sm:$0xf]
    %v207 = vld [vmem:[#allocation7 + $0x30] sm:$0xff]
    %v208 = vld [vmem:[#allocation7 + $0x38] sm:$0xf]
    %v209 = vld [vmem:[#allocation7 + $0x3c] sm:$0xff]
    %v210 = vld [vmem:[#allocation7 + $0x44] sm:$0xf]
    %v211 = vld [vmem:[#allocation7 + $0x48] sm:$0xff]
    %v212 = vld [vmem:[#allocation7 + $0x50] sm:$0xf]
    %v213 = vld [vmem:[#allocation7 + $0x54] sm:$0xff]
    %v214 = vld [vmem:[#allocation7 + $0x5c] sm:$0xf]
    %v215 = vld [vmem:[#allocation7 + $0x60] sm:$0xff]
    %v216 = vld [vmem:[#allocation7 + $0x68] sm:$0xf]
    %v217 = vld [vmem:[#allocation7 + $0x6c] sm:$0xff]
    %v218 = vld [vmem:[#allocation7 + $0x74] sm:$0xf]
    %v219 = vld [vmem:[#allocation7 + $0x78] sm:$0xff]
    %v220 = vld [vmem:[#allocation7 + $0x80] sm:$0xf]
    %v221 = vld [vmem:[#allocation7 + $0x84] sm:$0xff]
    %v222 = vld [vmem:[#allocation7 + $0x8c] sm:$0xf]
    %v223 = vld [vmem:[#allocation7 + $0x90] sm:$0xff]
    %v224 = vld [vmem:[#allocation7 + $0x98] sm:$0xf]
    %v225 = vld [vmem:[#allocation7 + $0x9c] sm:$0xff]
    %v226 = vld [vmem:[#allocation7 + $0xa4] sm:$0xf]
    %v227 = vld [vmem:[#allocation7 + $0xa8] sm:$0xff]
    %v228 = vld [vmem:[#allocation7 + $0xb0] sm:$0xf]
    %v229 = vld [vmem:[#allocation7 + $0xb4] sm:$0xff]
    %v230 = vld [vmem:[#allocation7 + $0xbc] sm:$0xf]
    %v231 = vld [vmem:[#allocation7 + $0xc0] sm:$0xff]
    %v232 = vld [vmem:[#allocation7 + $0xc8] sm:$0xf]
    %v233 = vld [vmem:[#allocation7 + $0xcc] sm:$0xff]
    %v234 = vld [vmem:[#allocation7 + $0xd4] sm:$0xf]
    %v235 = vld [vmem:[#allocation7 + $0xd8] sm:$0xff]
    %v236 = vld [vmem:[#allocation7 + $0xe0] sm:$0xf]
    %v237 = vld [vmem:[#allocation7 + $0xe4] sm:$0xff]
    %v238 = vld [vmem:[#allocation7 + $0xec] sm:$0xf]
    %v239 = vld [vmem:[#allocation7 + $0xf0] sm:$0xff]
    %v240 = vld [vmem:[#allocation7 + $0xf8] sm:$0xf]
    %v241 = vld [vmem:[#allocation7 + $0xfc] sm:$0xff]
    %v242 = vld [vmem:[#allocation7 + $0x104] sm:$0xf]
    %v243 = vld [vmem:[#allocation7 + $0x108] sm:$0xff]
    %v244 = vld [vmem:[#allocation7 + $0x110] sm:$0xf]
    %v245 = vld [vmem:[#allocation7 + $0x114] sm:$0xff]
    %v246 = vld [vmem:[#allocation7 + $0x11c] sm:$0xf]
    %v247 = vld [vmem:[#allocation7 + $0x120] sm:$0xff]
    %v248 = vld [vmem:[#allocation7 + $0x128] sm:$0xf]
    %v249 = vld [vmem:[#allocation7 + $0x12c] sm:$0xff]
    %v250 = vld [vmem:[#allocation7 + $0x134] sm:$0xf]
    %v251 = vld [vmem:[#allocation7 + $0x138] sm:$0xff]
    %v252 = vld [vmem:[#allocation7 + $0x140] sm:$0xf]
    %v253 = vld [vmem:[#allocation7 + $0x144] sm:$0xff]
    %v254 = vld [vmem:[#allocation7 + $0x14c] sm:$0xf]
    %v255 = vld [vmem:[#allocation7 + $0x150] sm:$0xff]
    %v256 = vld [vmem:[#allocation7 + $0x158] sm:$0xf]
    %v257 = vld [vmem:[#allocation7 + $0x15c] sm:$0xff]
    %v258 = vld [vmem:[#allocation7 + $0x164] sm:$0xf]
    %v259 = vld [vmem:[#allocation7 + $0x168] sm:$0xff]
    %v260 = vld [vmem:[#allocation7 + $0x170] sm:$0xf]
    %v261 = vld [vmem:[#allocation7 + $0x174] sm:$0xff]
    %v262 = vld [vmem:[#allocation7 + $0x17c] sm:$0xf]
    %v263 = vld [vmem:[#allocation7 + $0x180] sm:$0xff]
    %v264 = vld [vmem:[#allocation7 + $0x188] sm:$0xf]
    %v265 = vld [vmem:[#allocation7 + $0x18c] sm:$0xff]
    %v266 = vld [vmem:[#allocation7 + $0x194] sm:$0xf]
    %v267 = vld [vmem:[#allocation7 + $0x198] sm:$0xff]
    %v268 = vld [vmem:[#allocation7 + $0x1a0] sm:$0xf]
    %v269 = vld [vmem:[#allocation7 + $0x1a4] sm:$0xff]
    %v270 = vld [vmem:[#allocation7 + $0x1ac] sm:$0xf]
    %v271 = vld [vmem:[#allocation7 + $0x1b0] sm:$0xff]
    %v272 = vld [vmem:[#allocation7 + $0x1b8] sm:$0xf]
    %v273 = vld [vmem:[#allocation7 + $0x1bc] sm:$0xff]
    %v274 = vld [vmem:[#allocation7 + $0x1c4] sm:$0xf]
    %v275 = vld [vmem:[#allocation7 + $0x1c8] sm:$0xff]
    %v276 = vld [vmem:[#allocation7 + $0x1d0] sm:$0xf]
    %v277 = vld [vmem:[#allocation7 + $0x1d4] sm:$0xff]
    %v278 = vld [vmem:[#allocation7 + $0x1dc] sm:$0xf]
    %v279 = vld [vmem:[#allocation7 + $0x1e0] sm:$0xff]
    %v280 = vld [vmem:[#allocation7 + $0x1e8] sm:$0xf]
    %v281 = vld [vmem:[#allocation7 + $0x1ec] sm:$0xff]
    %v282 = vld [vmem:[#allocation7 + $0x1f4] sm:$0xf]
    %v283 = vld [vmem:[#allocation7 + $0x1f8] sm:$0xff]
    %v284 = vld [vmem:[#allocation7 + $0x200] sm:$0xf]
    %v285 = vld [vmem:[#allocation7 + $0x204] sm:$0xff]
    %v286 = vld [vmem:[#allocation7 + $0x20c] sm:$0xf]
    %v287 = vld [vmem:[#allocation7 + $0x210] sm:$0xff]
    %v288 = vld [vmem:[#allocation7 + $0x218] sm:$0xf]
    %v289 = vld [vmem:[#allocation7 + $0x21c] sm:$0xff]
    %v290 = vld [vmem:[#allocation7 + $0x224] sm:$0xf]
    %v291 = vld [vmem:[#allocation7 + $0x228] sm:$0xff]
    %v292 = vld [vmem:[#allocation7 + $0x230] sm:$0xf]
    %v293 = vld [vmem:[#allocation7 + $0x234] sm:$0xff]
    %v294 = vld [vmem:[#allocation7 + $0x23c] sm:$0xf]
    %v295 = vld [vmem:[#allocation7 + $0x240] sm:$0xff]
    %v296 = vld [vmem:[#allocation7 + $0x248] sm:$0xf]
    %v297 = vld [vmem:[#allocation7 + $0x24c] sm:$0xff]
    %v298 = vld [vmem:[#allocation7 + $0x254] sm:$0xf]
    %v299 = vld [vmem:[#allocation7 + $0x258] sm:$0xff]
    %v300 = vld [vmem:[#allocation7 + $0x260] sm:$0xf]
    %v301 = vld [vmem:[#allocation7 + $0x264] sm:$0xff]
    %v302 = vld [vmem:[#allocation7 + $0x26c] sm:$0xf]
    %v303 = vld [vmem:[#allocation7 + $0x270] sm:$0xff]
    %v304 = vld [vmem:[#allocation7 + $0x278] sm:$0xf]
    %v305 = vld [vmem:[#allocation7 + $0x27c] sm:$0xff]
    %v306 = vld [vmem:[#allocation7 + $0x284] sm:$0xf]
    %v307 = vld [vmem:[#allocation7 + $0x288] sm:$0xff]
    %v308 = vld [vmem:[#allocation7 + $0x290] sm:$0xf]
    %v309 = vld [vmem:[#allocation7 + $0x294] sm:$0xff]
    %v310 = vld [vmem:[#allocation7 + $0x29c] sm:$0xf]
    %v311 = vld [vmem:[#allocation7 + $0x2a0] sm:$0xff]
    %v312 = vld [vmem:[#allocation7 + $0x2a8] sm:$0xf]
    %v313 = vld [vmem:[#allocation7 + $0x2ac] sm:$0xff]
    %v314 = vld [vmem:[#allocation7 + $0x2b4] sm:$0xf]
    %v315 = vld [vmem:[#allocation7 + $0x2b8] sm:$0xff]
    %v316 = vld [vmem:[#allocation7 + $0x2c0] sm:$0xf]
    %v317 = vld [vmem:[#allocation7 + $0x2c4] sm:$0xff]
    %v318 = vld [vmem:[#allocation7 + $0x2cc] sm:$0xf]
    %v319 = vld [vmem:[#allocation7 + $0x2d0] sm:$0xff]
    %v320 = vld [vmem:[#allocation7 + $0x2d8] sm:$0xf]
    %v321 = vld [vmem:[#allocation7 + $0x2dc] sm:$0xff]
    %v322 = vld [vmem:[#allocation7 + $0x2e4] sm:$0xf]
    %v323 = vld [vmem:[#allocation7 + $0x2e8] sm:$0xff]
    %v324 = vld [vmem:[#allocation7 + $0x2f0] sm:$0xf]
    %v325 = vld [vmem:[#allocation7 + $0x2f4] sm:$0xff]
    %v326 = vld [vmem:[#allocation7 + $0x2fc] sm:$0xf]
    %v327 = vld [vmem:[%s5] sm:$0x7]
    %v329 = vperm.slane %v327, 0
    %v330 = vperm.slane %v327, 1
    %v331 = vperm.slane %v327, 2
    %v463 = vunpack.c.l.b16 %v199
    %v464 = vunpack.c.h.b16 %v199
    %v465 = vunpack.c.l.b16 %v200
    %v466 = vunpack.c.l.b16 %v201
    %v467 = vunpack.c.h.b16 %v201
    %v468 = vunpack.c.l.b16 %v202
    %v469 = vunpack.c.l.b16 %v203
    %v470 = vunpack.c.h.b16 %v203
    %v471 = vunpack.c.l.b16 %v204
    %v472 = vunpack.c.l.b16 %v205
    %v473 = vunpack.c.h.b16 %v205
    %v474 = vunpack.c.l.b16 %v206
    %v475 = vunpack.c.l.b16 %v207
    %v476 = vunpack.c.h.b16 %v207
    %v477 = vunpack.c.l.b16 %v208
    %v478 = vunpack.c.l.b16 %v209
    %v479 = vunpack.c.h.b16 %v209
    %v480 = vunpack.c.l.b16 %v210
    %v481 = vunpack.c.l.b16 %v211
    %v482 = vunpack.c.h.b16 %v211
    %v483 = vunpack.c.l.b16 %v212
    %v484 = vunpack.c.l.b16 %v213
    %v485 = vunpack.c.h.b16 %v213
    %v486 = vunpack.c.l.b16 %v214
    %v487 = vunpack.c.l.b16 %v215
    %v488 = vunpack.c.h.b16 %v215
    %v489 = vunpack.c.l.b16 %v216
    %v490 = vunpack.c.l.b16 %v217
    %v491 = vunpack.c.h.b16 %v217
    %v492 = vunpack.c.l.b16 %v218
    %v493 = vunpack.c.l.b16 %v219
    %v494 = vunpack.c.h.b16 %v219
    %v495 = vunpack.c.l.b16 %v220
    %v496 = vunpack.c.l.b16 %v221
    %v497 = vunpack.c.h.b16 %v221
    %v498 = vunpack.c.l.b16 %v222
    %v499 = vunpack.c.l.b16 %v223
    %v500 = vunpack.c.h.b16 %v223
    %v501 = vunpack.c.l.b16 %v224
    %v502 = vunpack.c.l.b16 %v225
    %v503 = vunpack.c.h.b16 %v225
    %v504 = vunpack.c.l.b16 %v226
    %v505 = vunpack.c.l.b16 %v227
    %v506 = vunpack.c.h.b16 %v227
    %v507 = vunpack.c.l.b16 %v228
    %v508 = vunpack.c.l.b16 %v229
    %v509 = vunpack.c.h.b16 %v229
    %v510 = vunpack.c.l.b16 %v230
    %v511 = vunpack.c.l.b16 %v231
    %v512 = vunpack.c.h.b16 %v231
    %v513 = vunpack.c.l.b16 %v232
    %v514 = vunpack.c.l.b16 %v233
    %v515 = vunpack.c.h.b16 %v233
    %v516 = vunpack.c.l.b16 %v234
    %v517 = vunpack.c.l.b16 %v235
    %v518 = vunpack.c.h.b16 %v235
    %v519 = vunpack.c.l.b16 %v236
    %v520 = vunpack.c.l.b16 %v237
    %v521 = vunpack.c.h.b16 %v237
    %v522 = vunpack.c.l.b16 %v238
    %v523 = vunpack.c.l.b16 %v239
    %v524 = vunpack.c.h.b16 %v239
    %v525 = vunpack.c.l.b16 %v240
    %v526 = vunpack.c.l.b16 %v241
    %v527 = vunpack.c.h.b16 %v241
    %v528 = vunpack.c.l.b16 %v242
    %v529 = vunpack.c.l.b16 %v243
    %v530 = vunpack.c.h.b16 %v243
    %v531 = vunpack.c.l.b16 %v244
    %v532 = vunpack.c.l.b16 %v245
    %v533 = vunpack.c.h.b16 %v245
    %v534 = vunpack.c.l.b16 %v246
    %v535 = vunpack.c.l.b16 %v247
    %v536 = vunpack.c.h.b16 %v247
    %v537 = vunpack.c.l.b16 %v248
    %v538 = vunpack.c.l.b16 %v249
    %v539 = vunpack.c.h.b16 %v249
    %v540 = vunpack.c.l.b16 %v250
    %v541 = vunpack.c.l.b16 %v251
    %v542 = vunpack.c.h.b16 %v251
    %v543 = vunpack.c.l.b16 %v252
    %v544 = vunpack.c.l.b16 %v253
    %v545 = vunpack.c.h.b16 %v253
    %v546 = vunpack.c.l.b16 %v254
    %v547 = vunpack.c.l.b16 %v255
    %v548 = vunpack.c.h.b16 %v255
    %v549 = vunpack.c.l.b16 %v256
    %v550 = vunpack.c.l.b16 %v257
    %v551 = vunpack.c.h.b16 %v257
    %v552 = vunpack.c.l.b16 %v258
    %v553 = vunpack.c.l.b16 %v259
    %v554 = vunpack.c.h.b16 %v259
    %v555 = vunpack.c.l.b16 %v260
    %v556 = vunpack.c.l.b16 %v261
    %v557 = vunpack.c.h.b16 %v261
    %v558 = vunpack.c.l.b16 %v262
    %v559 = vunpack.c.l.b16 %v263
    %v560 = vunpack.c.h.b16 %v263
    %v561 = vunpack.c.l.b16 %v264
    %v562 = vunpack.c.l.b16 %v265
    %v563 = vunpack.c.h.b16 %v265
    %v564 = vunpack.c.l.b16 %v266
    %v565 = vunpack.c.l.b16 %v267
    %v566 = vunpack.c.h.b16 %v267
    %v567 = vunpack.c.l.b16 %v268
    %v568 = vunpack.c.l.b16 %v269
    %v569 = vunpack.c.h.b16 %v269
    %v570 = vunpack.c.l.b16 %v270
    %v571 = vunpack.c.l.b16 %v271
    %v572 = vunpack.c.h.b16 %v271
    %v573 = vunpack.c.l.b16 %v272
    %v574 = vunpack.c.l.b16 %v273
    %v575 = vunpack.c.h.b16 %v273
    %v576 = vunpack.c.l.b16 %v274
    %v577 = vunpack.c.l.b16 %v275
    %v578 = vunpack.c.h.b16 %v275
    %v579 = vunpack.c.l.b16 %v276
    %v580 = vunpack.c.l.b16 %v277
    %v581 = vunpack.c.h.b16 %v277
    %v582 = vunpack.c.l.b16 %v278
    %v583 = vunpack.c.l.b16 %v279
    %v584 = vunpack.c.h.b16 %v279
    %v585 = vunpack.c.l.b16 %v280
    %v586 = vunpack.c.l.b16 %v281
    %v587 = vunpack.c.h.b16 %v281
    %v588 = vunpack.c.l.b16 %v282
    %v589 = vunpack.c.l.b16 %v283
    %v590 = vunpack.c.h.b16 %v283
    %v591 = vunpack.c.l.b16 %v284
    %v592 = vunpack.c.l.b16 %v285
    %v593 = vunpack.c.h.b16 %v285
    %v594 = vunpack.c.l.b16 %v286
    %v595 = vunpack.c.l.b16 %v287
    %v596 = vunpack.c.h.b16 %v287
    %v597 = vunpack.c.l.b16 %v288
    %v598 = vunpack.c.l.b16 %v289
    %v599 = vunpack.c.h.b16 %v289
    %v600 = vunpack.c.l.b16 %v290
    %v601 = vunpack.c.l.b16 %v291
    %v602 = vunpack.c.h.b16 %v291
    %v603 = vunpack.c.l.b16 %v292
    %v604 = vunpack.c.l.b16 %v293
    %v605 = vunpack.c.h.b16 %v293
    %v606 = vunpack.c.l.b16 %v294
    %v607 = vunpack.c.l.b16 %v295
    %v608 = vunpack.c.h.b16 %v295
    %v609 = vunpack.c.l.b16 %v296
    %v610 = vunpack.c.l.b16 %v297
    %v611 = vunpack.c.h.b16 %v297
    %v612 = vunpack.c.l.b16 %v298
    %v613 = vunpack.c.l.b16 %v299
    %v614 = vunpack.c.h.b16 %v299
    %v615 = vunpack.c.l.b16 %v300
    %v616 = vunpack.c.l.b16 %v301
    %v617 = vunpack.c.h.b16 %v301
    %v618 = vunpack.c.l.b16 %v302
    %v619 = vunpack.c.l.b16 %v303
    %v620 = vunpack.c.h.b16 %v303
    %v621 = vunpack.c.l.b16 %v304
    %v622 = vunpack.c.l.b16 %v305
    %v623 = vunpack.c.h.b16 %v305
    %v624 = vunpack.c.l.b16 %v306
    %v625 = vunpack.c.l.b16 %v307
    %v626 = vunpack.c.h.b16 %v307
    %v627 = vunpack.c.l.b16 %v308
    %v628 = vunpack.c.l.b16 %v309
    %v629 = vunpack.c.h.b16 %v309
    %v630 = vunpack.c.l.b16 %v310
    %v631 = vunpack.c.l.b16 %v311
    %v632 = vunpack.c.h.b16 %v311
    %v633 = vunpack.c.l.b16 %v312
    %v634 = vunpack.c.l.b16 %v313
    %v635 = vunpack.c.h.b16 %v313
    %v636 = vunpack.c.l.b16 %v314
    %v637 = vunpack.c.l.b16 %v315
    %v638 = vunpack.c.h.b16 %v315
    %v639 = vunpack.c.l.b16 %v316
    %v640 = vunpack.c.l.b16 %v317
    %v641 = vunpack.c.h.b16 %v317
    %v642 = vunpack.c.l.b16 %v318
    %v643 = vunpack.c.l.b16 %v319
    %v644 = vunpack.c.h.b16 %v319
    %v645 = vunpack.c.l.b16 %v320
    %v646 = vunpack.c.l.b16 %v321
    %v647 = vunpack.c.h.b16 %v321
    %v648 = vunpack.c.l.b16 %v322
    %v649 = vunpack.c.l.b16 %v323
    %v650 = vunpack.c.h.b16 %v323
    %v651 = vunpack.c.l.b16 %v324
    %v652 = vunpack.c.l.b16 %v325
    %v653 = vunpack.c.h.b16 %v325
    %v654 = vunpack.c.l.b16 %v326
    %v655 = vpack.c.b16 %v466, %v463
    %v656 = vpack.c.b16 %v467, %v464
    %v657 = vpack.c.b16 %v468, %v465
    %v658 = vpack.c.b16 %v472, %v469
    %v659 = vpack.c.b16 %v473, %v470
    %v660 = vpack.c.b16 %v474, %v471
    %v661 = vpack.c.b16 %v478, %v475
    %v662 = vpack.c.b16 %v479, %v476
    %v663 = vpack.c.b16 %v480, %v477
    %v664 = vpack.c.b16 %v484, %v481
    %v665 = vpack.c.b16 %v485, %v482
    %v666 = vpack.c.b16 %v486, %v483
    %v667 = vpack.c.b16 %v490, %v487
    %v668 = vpack.c.b16 %v491, %v488
    %v669 = vpack.c.b16 %v492, %v489
    %v670 = vpack.c.b16 %v496, %v493
    %v671 = vpack.c.b16 %v497, %v494
    %v672 = vpack.c.b16 %v498, %v495
    %v673 = vpack.c.b16 %v502, %v499
    %v674 = vpack.c.b16 %v503, %v500
    %v675 = vpack.c.b16 %v504, %v501
    %v676 = vpack.c.b16 %v508, %v505
    %v677 = vpack.c.b16 %v509, %v506
    %v678 = vpack.c.b16 %v510, %v507
    %v679 = vpack.c.b16 %v514, %v511
    %v680 = vpack.c.b16 %v515, %v512
    %v681 = vpack.c.b16 %v516, %v513
    %v682 = vpack.c.b16 %v520, %v517
    %v683 = vpack.c.b16 %v521, %v518
    %v684 = vpack.c.b16 %v522, %v519
    %v685 = vpack.c.b16 %v526, %v523
    %v686 = vpack.c.b16 %v527, %v524
    %v687 = vpack.c.b16 %v528, %v525
    %v688 = vpack.c.b16 %v532, %v529
    %v689 = vpack.c.b16 %v533, %v530
    %v690 = vpack.c.b16 %v534, %v531
    %v691 = vpack.c.b16 %v538, %v535
    %v692 = vpack.c.b16 %v539, %v536
    %v693 = vpack.c.b16 %v540, %v537
    %v694 = vpack.c.b16 %v544, %v541
    %v695 = vpack.c.b16 %v545, %v542
    %v696 = vpack.c.b16 %v546, %v543
    %v697 = vpack.c.b16 %v550, %v547
    %v698 = vpack.c.b16 %v551, %v548
    %v699 = vpack.c.b16 %v552, %v549
    %v700 = vpack.c.b16 %v556, %v553
    %v701 = vpack.c.b16 %v557, %v554
    %v702 = vpack.c.b16 %v558, %v555
    %v703 = vpack.c.b16 %v562, %v559
    %v704 = vpack.c.b16 %v563, %v560
    %v705 = vpack.c.b16 %v564, %v561
    %v706 = vpack.c.b16 %v568, %v565
    %v707 = vpack.c.b16 %v569, %v566
    %v708 = vpack.c.b16 %v570, %v567
    %v709 = vpack.c.b16 %v574, %v571
    %v710 = vpack.c.b16 %v575, %v572
    %v711 = vpack.c.b16 %v576, %v573
    %v712 = vpack.c.b16 %v580, %v577
    %v713 = vpack.c.b16 %v581, %v578
    %v714 = vpack.c.b16 %v582, %v579
    %v715 = vpack.c.b16 %v586, %v583
    %v716 = vpack.c.b16 %v587, %v584
    %v717 = vpack.c.b16 %v588, %v585
    %v718 = vpack.c.b16 %v592, %v589
    %v719 = vpack.c.b16 %v593, %v590
    %v720 = vpack.c.b16 %v594, %v591
    %v721 = vpack.c.b16 %v598, %v595
    %v722 = vpack.c.b16 %v599, %v596
    %v723 = vpack.c.b16 %v600, %v597
    %v724 = vpack.c.b16 %v604, %v601
    %v725 = vpack.c.b16 %v605, %v602
    %v726 = vpack.c.b16 %v606, %v603
    %v727 = vpack.c.b16 %v610, %v607
    %v728 = vpack.c.b16 %v611, %v608
    %v729 = vpack.c.b16 %v612, %v609
    %v730 = vpack.c.b16 %v616, %v613
    %v731 = vpack.c.b16 %v617, %v614
    %v732 = vpack.c.b16 %v618, %v615
    %v733 = vpack.c.b16 %v622, %v619
    %v734 = vpack.c.b16 %v623, %v620
    %v735 = vpack.c.b16 %v624, %v621
    %v736 = vpack.c.b16 %v628, %v625
    %v737 = vpack.c.b16 %v629, %v626
    %v738 = vpack.c.b16 %v630, %v627
    %v739 = vpack.c.b16 %v634, %v631
    %v740 = vpack.c.b16 %v635, %v632
    %v741 = vpack.c.b16 %v636, %v633
    %v742 = vpack.c.b16 %v640, %v637
    %v743 = vpack.c.b16 %v641, %v638
    %v744 = vpack.c.b16 %v642, %v639
    %v745 = vpack.c.b16 %v646, %v643
    %v746 = vpack.c.b16 %v647, %v644
    %v747 = vpack.c.b16 %v648, %v645
    %v748 = vpack.c.b16 %v652, %v649
    %v749 = vpack.c.b16 %v653, %v650
    %v750 = vpack.c.b16 %v654, %v651
    %847 = vmatpush.bf16.msra.mxu0 %v676
    %848 = vmatpush.bf16.msra.mxu0 %v673
    %849 = vmatpush.bf16.msra.mxu0 %v670
    %850 = vmatpush.bf16.msra.mxu0 %v667
    %851 = vmatpush.bf16.msra.mxu0 %v664
    %852 = vmatpush.bf16.msra.mxu0 %v661
    %853 = vmatpush.bf16.msra.mxu0 %v658
    %854 = vmatpush.bf16.msra.mxu0 %v655
    %855 = vmatmul.bf16.gmra.mxu0 %v195
    %v856 = vpop.f32.mrf.mxu0
    %v857 = vadd.f32 %v329, %v856
    %v858 = vpop.f32.mrf.mxu0
    %859 = vdwg.mxu0
    %860 = vmatpush.bf16.msra.mxu0 %v700
    %861 = vmatpush.bf16.msra.mxu0 %v697
    %862 = vmatpush.bf16.msra.mxu0 %v694
    %863 = vmatpush.bf16.msra.mxu0 %v691
    %864 = vmatpush.bf16.msra.mxu0 %v688
    %865 = vmatpush.bf16.msra.mxu0 %v685
    %866 = vmatpush.bf16.msra.mxu0 %v682
    %867 = vmatpush.bf16.msra.mxu0 %v679
    %868 = vmatmul.bf16.gmra.mxu0 %v196
    %v869 = vpop.f32.mrf.mxu0
    %v870 = vadd.f32 %v857, %v869
    %v871 = vpop.f32.mrf.mxu0
    %872 = vdwg.mxu0
    %873 = vmatpush.bf16.msra.mxu0 %v724
    %874 = vmatpush.bf16.msra.mxu0 %v721
    %875 = vmatpush.bf16.msra.mxu0 %v718
    %876 = vmatpush.bf16.msra.mxu0 %v715
    %877 = vmatpush.bf16.msra.mxu0 %v712
    %878 = vmatpush.bf16.msra.mxu0 %v709
    %879 = vmatpush.bf16.msra.mxu0 %v706
    %880 = vmatpush.bf16.msra.mxu0 %v703
    %881 = vmatmul.bf16.gmra.mxu0 %v197
    %v882 = vpop.f32.mrf.mxu0
    %v883 = vadd.f32 %v870, %v882
    %v884 = vpop.f32.mrf.mxu0
    %885 = vdwg.mxu0
    %886 = vmatpush.bf16.msra.mxu0 %v748
    %887 = vmatpush.bf16.msra.mxu0 %v745
    %888 = vmatpush.bf16.msra.mxu0 %v742
    %889 = vmatpush.bf16.msra.mxu0 %v739
    %890 = vmatpush.bf16.msra.mxu0 %v736
    %891 = vmatpush.bf16.msra.mxu0 %v733
    %892 = vmatpush.bf16.msra.mxu0 %v730
    %893 = vmatpush.bf16.msra.mxu0 %v727
    %894 = vmatmul.bf16.gmra.mxu0 %v198
    %v895 = vpop.f32.mrf.mxu0
    %v896 = vadd.f32 %v883, %v895
    %v897 = vpop.f32.mrf.mxu0
    %898 = vdwg.mxu0
    %899 = vmatpush.bf16.msra.mxu0 %v677
    %900 = vmatpush.bf16.msra.mxu0 %v674
    %901 = vmatpush.bf16.msra.mxu0 %v671
    %902 = vmatpush.bf16.msra.mxu0 %v668
    %903 = vmatpush.bf16.msra.mxu0 %v665
    %904 = vmatpush.bf16.msra.mxu0 %v662
    %905 = vmatpush.bf16.msra.mxu0 %v659
    %906 = vmatpush.bf16.msra.mxu0 %v656
    %907 = vmatmul.bf16.gmra.mxu0 %v195
    %v908 = vpop.f32.mrf.mxu0
    %v909 = vadd.f32 %v330, %v908
    %v910 = vpop.f32.mrf.mxu0
    %911 = vdwg.mxu0
    %912 = vmatpush.bf16.msra.mxu0 %v701
    %913 = vmatpush.bf16.msra.mxu0 %v698
    %914 = vmatpush.bf16.msra.mxu0 %v695
    %915 = vmatpush.bf16.msra.mxu0 %v692
    %916 = vmatpush.bf16.msra.mxu0 %v689
    %917 = vmatpush.bf16.msra.mxu0 %v686
    %918 = vmatpush.bf16.msra.mxu0 %v683
    %919 = vmatpush.bf16.msra.mxu0 %v680
    %920 = vmatmul.bf16.gmra.mxu0 %v196
    %v921 = vpop.f32.mrf.mxu0
    %v922 = vadd.f32 %v909, %v921
    %v923 = vpop.f32.mrf.mxu0
    %924 = vdwg.mxu0
    %925 = vmatpush.bf16.msra.mxu0 %v725
    %926 = vmatpush.bf16.msra.mxu0 %v722
    %927 = vmatpush.bf16.msra.mxu0 %v719
    %928 = vmatpush.bf16.msra.mxu0 %v716
    %929 = vmatpush.bf16.msra.mxu0 %v713
    %930 = vmatpush.bf16.msra.mxu0 %v710
    %931 = vmatpush.bf16.msra.mxu0 %v707
    %932 = vmatpush.bf16.msra.mxu0 %v704
    %933 = vmatmul.bf16.gmra.mxu0 %v197
    %v934 = vpop.f32.mrf.mxu0
    %v935 = vadd.f32 %v922, %v934
    %v936 = vpop.f32.mrf.mxu0
    %937 = vdwg.mxu0
    %938 = vmatpush.bf16.msra.mxu0 %v749
    %939 = vmatpush.bf16.msra.mxu0 %v746
    %940 = vmatpush.bf16.msra.mxu0 %v743
    %941 = vmatpush.bf16.msra.mxu0 %v740
    %942 = vmatpush.bf16.msra.mxu0 %v737
    %943 = vmatpush.bf16.msra.mxu0 %v734
    %944 = vmatpush.bf16.msra.mxu0 %v731
    %945 = vmatpush.bf16.msra.mxu0 %v728
    %946 = vmatmul.bf16.gmra.mxu0 %v198
    %v947 = vpop.f32.mrf.mxu0
    %v948 = vadd.f32 %v935, %v947
    %v949 = vpop.f32.mrf.mxu0
    %950 = vdwg.mxu0
    %951 = vmatpush.bf16.msra.mxu0 %v678
    %952 = vmatpush.bf16.msra.mxu0 %v675
    %953 = vmatpush.bf16.msra.mxu0 %v672
    %954 = vmatpush.bf16.msra.mxu0 %v669
    %955 = vmatpush.bf16.msra.mxu0 %v666
    %956 = vmatpush.bf16.msra.mxu0 %v663
    %957 = vmatpush.bf16.msra.mxu0 %v660
    %958 = vmatpush.bf16.msra.mxu0 %v657
    %959 = vmatmul.bf16.gmra.mxu0 %v195
    %v960 = vpop.f32.mrf.mxu0
    %v961 = vadd.f32 %v331, %v960
    %v962 = vpop.f32.mrf.mxu0
    %963 = vdwg.mxu0
    %964 = vmatpush.bf16.msra.mxu0 %v702
    %965 = vmatpush.bf16.msra.mxu0 %v699
    %966 = vmatpush.bf16.msra.mxu0 %v696
    %967 = vmatpush.bf16.msra.mxu0 %v693
    %968 = vmatpush.bf16.msra.mxu0 %v690
    %969 = vmatpush.bf16.msra.mxu0 %v687
    %970 = vmatpush.bf16.msra.mxu0 %v684
    %971 = vmatpush.bf16.msra.mxu0 %v681
    %972 = vmatmul.bf16.gmra.mxu0 %v196
    %v973 = vpop.f32.mrf.mxu0
    %v974 = vadd.f32 %v961, %v973
    %v975 = vpop.f32.mrf.mxu0
    %976 = vdwg.mxu0
    %977 = vmatpush.bf16.msra.mxu0 %v726
    %978 = vmatpush.bf16.msra.mxu0 %v723
    %979 = vmatpush.bf16.msra.mxu0 %v720
    %980 = vmatpush.bf16.msra.mxu0 %v717
    %981 = vmatpush.bf16.msra.mxu0 %v714
    %982 = vmatpush.bf16.msra.mxu0 %v711
    %983 = vmatpush.bf16.msra.mxu0 %v708
    %984 = vmatpush.bf16.msra.mxu0 %v705
    %985 = vmatmul.bf16.gmra.mxu0 %v197
    %v986 = vpop.f32.mrf.mxu0
    %v987 = vadd.f32 %v974, %v986
    %v988 = vpop.f32.mrf.mxu0
    %989 = vdwg.mxu0
    %990 = vmatpush.bf16.msra.mxu0 %v750
    %991 = vmatpush.bf16.msra.mxu0 %v747
    %992 = vmatpush.bf16.msra.mxu0 %v744
    %993 = vmatpush.bf16.msra.mxu0 %v741
    %994 = vmatpush.bf16.msra.mxu0 %v738
    %995 = vmatpush.bf16.msra.mxu0 %v735
    %996 = vmatpush.bf16.msra.mxu0 %v732
    %997 = vmatpush.bf16.msra.mxu0 %v729
    %998 = vmatmul.bf16.gmra.mxu0 %v198
    %v999 = vpop.f32.mrf.mxu0
    %v1000 = vadd.f32 %v987, %v999
    %v1001 = vpop.f32.mrf.mxu0
    %1002 = vdwg.mxu0
    %v1003 = vmax.f32 %v896, 0.0
    %v1004 = vmax.f32 %v948, 0.0
    %v1005 = vmax.f32 %v1000, 0.0
    %v1006 = vld [vmem:[%s6] sm:$0x7]
    %v1008 = vperm.slane %v1006, 0
    %v1009 = vperm.slane %v1006, 1
    %v1010 = vperm.slane %v1006, 2
    %v1014 = vmul.f32 %v1003, %v1008
    %v1015 = vmul.f32 %v1004, %v1009
    %v1016 = vmul.f32 %v1005, %v1010
    %v1017 = vadd.f32 %v1014, %v1015
    %v1018 = vadd.f32 %v1017, %v1016
    %1019 = vadd.xlane.f32.xlu0 %v1018
    %v1020 = vpop.xlane.xlu0 %1019
    %s1021 = sld [smem:[#allocation3]]
    %v1022 = vstv %s1021
    %v1023 = vadd.f32 %v1020, %v1022
    %v1025 = vlaneseq
    %v1026 = vand.u32 %v1025, 127
    %v1027 = vperm.slane %v1023, %v1026
    %vm1029 = vcmask 57344
    %1030 = vst.msk [vmem:[#allocation9] sm:$0x1] %vm1029, %v1027
    // Predicated region
    $region42: #{tpu_custom_call.1} parent=1 // pred_check
      _
    $region43: #{tpu_custom_call.1} parent=1 // pred_check_branch
      %1032 = sbr.rel (0) target = $region45
    $region44: #{tpu_custom_call.1} parent=1 // pred_region
      %1034 = vsyncadd [#allocation6], 0
      %s1036 = sshll.u32 [#allocation9], 4
      %s1037 = int_to_ptr.vmem [resolvable:$true] %s1036
      %s1038 = sshll.u32 %s8, 4
      %s1039 = int_to_ptr.hbm [resolvable:$true] %s1038
      %1041 = dma.vmem_to_hbm [thread:$0]  %s1037, 16, %s1039, [#allocation6]
    $region45: #{tpu_custom_call.1} parent=1 // pred_fallthru
      _
    // Predicated region
    $region46: #{tpu_custom_call.1} parent=1 // pred_check
      _
    $region47: #{tpu_custom_call.1} parent=1 // pred_check_branch
      %1043 = sbr.rel (0) target = $region49
    $region48: #{tpu_custom_call.1} parent=1 // pred_region
      %1045 = dma.done [#allocation6], 16
    $region49: #{tpu_custom_call.1} parent=1 // pred_fallthru
      _
    %1046 = vsyncpa [#allocation5], 1
    %1047 = vsyncpa [#allocation8], 1
    %1048 = vsyncpa [#allocation6], 1

</llo_original>
